<compile_context>
chip_gen: v7x
topology: tpu7x:2x2x1
jax: 0.10.0
libtpu: 0.0.40
codegen_flags: <defaults>
</compile_context>

<pallas_src>
import functools

import jax
import jax.numpy as jnp
from jax import lax
from jax.experimental import pallas as pl
from jax.experimental.pallas import tpu as pltpu


def _round_up(x: int, m: int) -> int:
    return ((x + m - 1) // m) * m


def _linear_dyn_op_kernel(present_ref, idx_ref, emb_ref, mat_ref, out_ref,
                          acc_ref):
    i = pl.program_id(0)          # row-block index
    op = pl.program_id(1)         # operator index (reduction axis)

    @pl.when(op == 0)
    def _init():
        acc_ref[...] = jnp.zeros_like(acc_ref)

    # Skip the MXU work entirely if no row in this block uses this operator.
    @pl.when(present_ref[i, op] != 0)
    def _compute():
        emb = emb_ref[...]        # (tn, Dp), native dtype
        mat = mat_ref[0]          # (Dp, Dp), native dtype
        # y[n, d] = sum_k emb[n, k] * mat[d, k]   (== M[op] @ emb[n])
        # dot_general with contracting dims (1, 1): no materialized transpose.
        y = lax.dot_general(
            emb, mat,
            dimension_numbers=(((1,), (1,)), ((), ())),
            preferred_element_type=jnp.float32)
        mask = idx_ref[...] == op                     # (tn, 1) bool
        acc_ref[...] += jnp.where(mask, y, 0.0)

    @pl.when(op == pl.num_programs(1) - 1)
    def _finalize():
        out_ref[...] = acc_ref[...].astype(out_ref.dtype)


def linear_dynamic_operator_forward(linear_transformations, embeddings,
                                    operator_idxs, *, block_rows: int = 256):
    """Pallas-TPU equivalent of LinearDynamicOperator.forward."""
    num_ops, D, D2 = linear_transformations.shape
    assert D == D2, "operator matrices must be square"
    lead = embeddings.shape[:-1]
    assert embeddings.shape[-1] == D, "embedding dim mismatch"
    assert operator_idxs.shape == lead, "operator_idxs shape mismatch"

    out_dtype = embeddings.dtype
    emb = embeddings.reshape(-1, D)
    idx = operator_idxs.reshape(-1).astype(jnp.int32)
    N = emb.shape[0]

    # Lane-dense padding: D -> multiple of 128, rows -> multiple of tile.
    Dp = _round_up(D, 128)
    tn = min(block_rows, _round_up(N, 8))
    Np = _round_up(N, tn)
    nb = Np // tn

    emb_p = jnp.zeros((Np, Dp), dtype=emb.dtype).at[:N, :D].set(emb)
    mats_p = (jnp.zeros((num_ops, Dp, Dp), dtype=linear_transformations.dtype)
              .at[:, :D, :D].set(linear_transformations))
    # Padding rows get operator id == num_ops (matches nothing -> output 0).
    idx_p = jnp.full((Np, 1), num_ops, dtype=jnp.int32).at[:N, 0].set(idx)

    # (row-block, operator) presence flags for compute skipping (SMEM prefetch).
    blocks_idx = idx_p.reshape(nb, tn)
    present = jnp.any(
        blocks_idx[:, :, None] == jnp.arange(num_ops, dtype=jnp.int32)[None, None, :],
        axis=1).astype(jnp.int32)                              # (nb, num_ops)

    # VMEM budget: double-buffered in/out tiles + f32 accumulator + headroom.
    isz = jnp.dtype(emb.dtype).itemsize
    tile_bytes = (tn * Dp * isz          # embeddings tile
                  + Dp * Dp * isz        # operator matrix tile
                  + tn * 4               # idx tile
                  + tn * Dp * isz)       # output tile
    vmem_bytes = 2 * tile_bytes + tn * Dp * 4 + (2 << 20)
    vmem_limit = int(min(max(vmem_bytes, 32 << 20), 48 << 20))

    grid_spec = pltpu.PrefetchScalarGridSpec(
        num_scalar_prefetch=1,
        grid=(nb, num_ops),
        in_specs=[
            pl.BlockSpec((tn, 1), lambda i, op, present: (i, 0)),      # idx
            pl.BlockSpec((tn, Dp), lambda i, op, present: (i, 0)),     # emb
            pl.BlockSpec((1, Dp, Dp), lambda i, op, present: (op, 0, 0)),  # mats
        ],
        out_specs=pl.BlockSpec((tn, Dp), lambda i, op, present: (i, 0)),
        scratch_shapes=[pltpu.VMEM((tn, Dp), jnp.float32)],
    )

    out_p = pl.pallas_call(
        _linear_dyn_op_kernel,
        out_shape=jax.ShapeDtypeStruct((Np, Dp), out_dtype),
        grid_spec=grid_spec,
        compiler_params=pltpu.CompilerParams(
            dimension_semantics=("parallel", "arbitrary"),
            vmem_limit_bytes=vmem_limit),
    )(present, idx_p, emb_p, mats_p)

    return out_p[:N, :D].reshape(*lead, D)


def _reference(linear_transformations, embeddings, operator_idxs):
    # Mirrors torch.matmul(M[idx], emb.unsqueeze(-1)).squeeze(-1)
    gathered = linear_transformations[operator_idxs]          # (..., D, D)
    return jnp.einsum('...dk,...k->...d', gathered, embeddings)


if __name__ == "__main__":
    key = jax.random.PRNGKey(0)
    k1, k2, k3 = jax.random.split(key, 3)

    dim = 32
    num_operations = 4
    batch = (2, 8)

    # Module init is identity matrices; perturb them so the gather + matmul
    # are actually exercised (forward supports arbitrary weights).
    eye = jnp.eye(dim, dtype=jnp.float32)
    linear_transformations = (
        jnp.broadcast_to(eye, (num_operations, dim, dim))
        + 0.1 * jax.random.normal(k1, (num_operations, dim, dim),
                                  dtype=jnp.float32))

    embeddings = jax.random.normal(k2, (*batch, dim), dtype=jnp.float32)
    operator_idxs = jax.random.randint(k3, batch, 0, num_operations,
                                       dtype=jnp.int32)

    out = linear_dynamic_operator_forward(linear_transformations, embeddings,
                                          operator_idxs)
    out = jax.block_until_ready(out)

    ref = _reference(linear_transformations, embeddings, operator_idxs)
    assert out.shape == embeddings.shape
    assert jnp.allclose(out, ref, atol=1e-4, rtol=1e-4), float(
        jnp.max(jnp.abs(out - ref)))

    print("KERNEL_OK")
</pallas_src>

<mosaic_0001>
module attributes {stable_mosaic.version = 11 : i64} {
  func.func @_linear_dyn_op_kernel(%arg0: i32, %arg1: i32, %arg2: memref<1x4xi32, #tpu.memory_space<smem>>, %arg3: memref<16x1xi32, #tpu.memory_space<vmem>>, %arg4: memref<16x128xf32, #tpu.memory_space<vmem>>, %arg5: memref<1x128x128xf32, #tpu.memory_space<vmem>>, %arg6: memref<16x128xf32, #tpu.memory_space<vmem>>, %arg7: memref<16x128xf32, #tpu.memory_space<vmem>>) attributes {dimension_semantics = [#tpu.dimension_semantics<parallel>, #tpu.dimension_semantics<arbitrary>], iteration_bounds = array<i64: 1, 4>, scalar_prefetch = 1 : i64, scratch_operands = 1 : i64, tpu.core_type = #tpu.core_type<tc>, window_params = [{transform_indices = @transform_0, window_bounds = array<i64: 16, 1>}, {transform_indices = @transform_1, window_bounds = array<i64: 16, 128>}, {transform_indices = @transform_2, window_bounds = array<i64: 1, 128, 128>}, {transform_indices = @transform_3, window_bounds = array<i64: 16, 128>}]} {
    %c0_i32 = arith.constant 0 : i32
    %0 = arith.cmpi eq, %arg1, %c0_i32 : i32
    %1 = arith.extui %0 : i1 to i32
    %c0_i32_0 = arith.constant 0 : i32
    %2 = arith.cmpi ne, %1, %c0_i32_0 : i32
    scf.if %2 {
      %cst = arith.constant 0.000000e+00 : f32
      %12 = vector.broadcast %cst : f32 to vector<16x128xf32>
      %c0 = arith.constant 0 : index
      %c0_4 = arith.constant 0 : index
      %13 = vector.load %arg7[%c0, %c0_4] : memref<16x128xf32, #tpu.memory_space<vmem>>, vector<16x128xf32>
      tpu.vector_store %arg7[%c0, %c0_4], %12 {strides = array<i32>} : memref<16x128xf32, #tpu.memory_space<vmem>>, vector<16x128xf32>,
    } else {
    }
    %3 = arith.index_cast %arg0 : i32 to index
    %4 = arith.index_cast %arg1 : i32 to index
    %5 = memref.load %arg2[%3, %4] : memref<1x4xi32, #tpu.memory_space<smem>>
    %c0_i32_1 = arith.constant 0 : i32
    %6 = arith.cmpi ne, %5, %c0_i32_1 : i32
    %7 = arith.extui %6 : i1 to i32
    %c0_i32_2 = arith.constant 0 : i32
    %8 = arith.cmpi ne, %7, %c0_i32_2 : i32
    scf.if %8 {
      %c0 = arith.constant 0 : index
      %c0_4 = arith.constant 0 : index
      %12 = vector.load %arg4[%c0, %c0_4] : memref<16x128xf32, #tpu.memory_space<vmem>>, vector<16x128xf32>
      %c0_5 = arith.constant 0 : index
      %c0_6 = arith.constant 0 : index
      %c0_7 = arith.constant 0 : index
      %13 = vector.load %arg5[%c0_5, %c0_6, %c0_7] : memref<1x128x128xf32, #tpu.memory_space<vmem>>, vector<1x128x128xf32>
      %14 = vector.shape_cast %13 : vector<1x128x128xf32> to vector<128x128xf32>
      %cst = arith.constant dense<0.000000e+00> : vector<16x128xf32>
      %15 = tpu.matmul %12, %14, %cst {dimension_numbers = #tpu.dot_dimension_numbers<[1], [1], [0], [0], [0, 0, 1, 0], [], []>} : vector<16x128xf32>, vector<128x128xf32>, vector<16x128xf32> -> vector<16x128xf32>
      %c0_8 = arith.constant 0 : index
      %c0_9 = arith.constant 0 : index
      %16 = vector.load %arg3[%c0_8, %c0_9] : memref<16x1xi32, #tpu.memory_space<vmem>>, vector<16x1xi32>
      %17 = vector.broadcast %arg1 : i32 to vector<16x1xi32>
      %18 = arith.cmpi eq, %16, %17 : vector<16x1xi32>
      %c0_10 = arith.constant 0 : index
      %c0_11 = arith.constant 0 : index
      %19 = vector.load %arg7[%c0_10, %c0_11] : memref<16x128xf32, #tpu.memory_space<vmem>>, vector<16x128xf32>
      %cst_12 = arith.constant 0.000000e+00 : f32
      %20 = vector.shape_cast %18 : vector<16x1xi1> to vector<16x1xi1>
      %21 = vector.broadcast %20 : vector<16x1xi1> to vector<16x128xi1>
      %22 = vector.broadcast %cst_12 : f32 to vector<16x128xf32>
      %23 = arith.select %21, %15, %22 : vector<16x128xi1>, vector<16x128xf32>
      %24 = arith.addf %19, %23 : vector<16x128xf32>
      %c0_13 = arith.constant 0 : index
      %c0_14 = arith.constant 0 : index
      %25 = vector.load %arg7[%c0_13, %c0_14] : memref<16x128xf32, #tpu.memory_space<vmem>>, vector<16x128xf32>
      tpu.vector_store %arg7[%c0_13, %c0_14], %24 {strides = array<i32>} : memref<16x128xf32, #tpu.memory_space<vmem>>, vector<16x128xf32>,
    } else {
    }
    %c3_i32 = arith.constant 3 : i32
    %9 = arith.cmpi eq, %arg1, %c3_i32 : i32
    %10 = arith.extui %9 : i1 to i32
    %c0_i32_3 = arith.constant 0 : i32
    %11 = arith.cmpi ne, %10, %c0_i32_3 : i32
    scf.if %11 {
      %c0 = arith.constant 0 : index
      %c0_4 = arith.constant 0 : index
      %12 = vector.load %arg7[%c0, %c0_4] : memref<16x128xf32, #tpu.memory_space<vmem>>, vector<16x128xf32>
      %c0_5 = arith.constant 0 : index
      %c0_6 = arith.constant 0 : index
      %13 = vector.load %arg6[%c0_5, %c0_6] : memref<16x128xf32, #tpu.memory_space<vmem>>, vector<16x128xf32>
      tpu.vector_store %arg6[%c0_5, %c0_6], %12 {strides = array<i32>} : memref<16x128xf32, #tpu.memory_space<vmem>>, vector<16x128xf32>,
    } else {
    }
    return
  }
  func.func @transform_0(%arg0: i32, %arg1: i32, %arg2: memref<1x4xi32, #tpu.memory_space<smem>>) -> (i32, i32) {
    %c0_i32 = arith.constant 0 : i32
    %c0_i32_0 = arith.constant 0 : i32
    return %arg0, %c0_i32 : i32, i32
  }
  func.func @transform_1(%arg0: i32, %arg1: i32, %arg2: memref<1x4xi32, #tpu.memory_space<smem>>) -> (i32, i32) {
    %c0_i32 = arith.constant 0 : i32
    %c0_i32_0 = arith.constant 0 : i32
    return %arg0, %c0_i32 : i32, i32
  }
  func.func @transform_2(%arg0: i32, %arg1: i32, %arg2: memref<1x4xi32, #tpu.memory_space<smem>>) -> (i32, i32, i32) {
    %c0_i32 = arith.constant 0 : i32
    %c0_i32_0 = arith.constant 0 : i32
    %c0_i32_1 = arith.constant 0 : i32
    return %arg1, %c0_i32, %c0_i32_0 : i32, i32, i32
  }
  func.func @transform_3(%arg0: i32, %arg1: i32, %arg2: memref<1x4xi32, #tpu.memory_space<smem>>) -> (i32, i32) {
    %c0_i32 = arith.constant 0 : i32
    %c0_i32_0 = arith.constant 0 : i32
    return %arg0, %c0_i32 : i32, i32
  }
}

</mosaic_0001>

<llo_original>
// kernel: tpu_custom_call.1
$region0: #{tpu_custom_call.1}
  #allocation0 [shape = 'u32[]', space=smem, size = 0x4, offset = 0x4, fixed_abs, tag = 'smem constant byte address 0x4 - core index']
  #allocation1 [shape = 'u32[144,128]{1,0:T(1,128)}', space=vmem, size = 0x12000, scoped, tag = 'internal scratch']
  #allocation2 [shape = 'f32[16,128]{1,0:T(8,128)}', space=vmem, size = 0x2000, scoped, tag = 'scratch operand']
  #allocation3 [shape = 's32[1]{0}', space=sflag, size = 0x4, scoped, tag = 'scoped memory for tpu_custom_call.1']
  #allocation4 [shape = 'u8[512]{0}', space=smem, size = 0x200, scoped, tag = 'prefetched SMEM operand 0']
  %s0 = inlined_call_operand.vmem [shape: s32[1,4], index: 0, kind: input, shape index: {}]
  %s1 = inlined_call_operand.vmem [shape: s32[16,1], index: 1, kind: input, shape index: {}]
  %s2 = inlined_call_operand.vmem [shape: f32[16,128], index: 2, kind: input, shape index: {}]
  %s3 = inlined_call_operand.hbm [shape: f32[4,128,128], index: 3, kind: input, shape index: {}]
  %s4 = inlined_call_operand.hbm [shape: f32[16,128], index: 4, kind: output, shape index: {}]
  %s5 = sld [smem:[#allocation0]]
  $region61: #{tpu_custom_call.1} parent=0
    _
  %s7 = ssub.s32 1, %s5
  %s8 = scalar_select 0, %s7, %s5
  %s9 = sshll.u32 %s0, 4
  %s10 = int_to_ptr.vmem [resolvable:$true] %s9
  %12 = dma.vmem_to_smem %s10, 16, [#allocation4], [#allocation3]
  %13 = dma.done [#allocation3], 16
  %14 = sfence
  $region1: #{tpu_custom_call.1} parent=0
    #allocation5 [shape = 'u8[131072]{0}', space=vmem, size = 0x20000, scoped, tag = 'input window, operand 3']
    #allocation6 [shape = 's32[2]{0}', space=sflag, size = 0x8, scoped, tag = 'scoped memory for tpu_custom_call.1']
    #allocation7 [shape = 's32[2]{0}', space=sflag, size = 0x8, scoped, tag = 'scoped memory for tpu_custom_call.1']
    #allocation8 [shape = 'u8[8192]{0}', space=vmem, size = 0x2000, scoped, tag = 'output window, operand 0, single buffered']
    %15 = vsyncpa [#allocation6], 0
    %s16 = scalar_lea.sflag [#allocation6], 1
    %17 = vsyncpa %s16, 0
    %18 = vsyncpa [#allocation7], 0
    loop: start=0, step=1, limit=6
    $region2: #{tpu_custom_call.1} parent=1 // loop_pre_header
      _
    $region3: #{tpu_custom_call.1} parent=1 // loop_header
      %s20 = sphi 0, %s24
      %p21 = scmp.ge.s32.totalorder %s20, 6
      %s27 = sphi 0, %s39
      %s28 = sphi 0, %s35
      %s29 = sphi 0, %s27
      %s30 = sphi 0, %s28
      %s31 = sphi 0, %s29
      %s32 = sphi 0, %s30
      %s42 = sphi 0, %s44
      %s45 = sphi 0, %s42
      %s46 = sphi 0, %s45
      %s62 = sphi 0, %s46
      %s68 = sphi 0, %s70
      %s71 = sphi 0, %s68
      %s72 = sphi 0, %s71
      %s88 = sphi 0, %s72
      %s94 = sphi 0, %s96
      %s97 = sphi 0, %s94
      %s98 = sphi 0, %s97
      %s114 = sphi 0, %s98
      %s120 = sphi 0, %s122
      %s123 = sphi 0, %s120
      %s124 = sphi 0, %s123
      %s140 = sphi 0, %s124
    $region4: #{tpu_custom_call.1} parent=1 // loop_header_branch
      %23 = sbr.rel (%p21) target = $region8
    $region5: #{tpu_custom_call.1} parent=1 // loop_body
      %s25 = ssub.s32 %s20, 1
      %s26 = ssub.s32 %s20, 2
      %s33 = sadd.s32 1, %s28
      %p34 = scmp.ge.s32.totalorder %s33, 4
      %s35 = scalar_select %p34, 0, %s33
      %s36 = sadd.s32 1, %s27
      %s37 = scalar_select %p34, %s36, %s27
      %p38 = scmp.ge.s32.totalorder %s37, 1
      %s39 = scalar_select %p38, 0, %s37
      %s40 = ssub.s32 %s27, %s39
      %p41 = scmp.eq.s32.totalorder %s40, 0
      %s43 = sadd.s32 %s42, 1
      %s44 = scalar_select %p41, %s42, %s43
      %p47 = pneg %p41
      %p48 = scmp.eq.s32.totalorder %s20, 3
      %p49 = por %p47, %p48
      %p50 = scmp.ne.s32.totalorder %s42, %s45
      %p51 = scmp.eq.s32.totalorder %s20, 0
      %p52 = por %p50, %p51
      %p53 = scmp.ne.s32.totalorder %s42, %s45
      %p54 = scmp.eq.s32.totalorder %s25, 3
      %p55 = por %p53, %p54
      %p56 = scmp.ne.s32.totalorder %s45, %s46
      %p57 = scmp.eq.s32.totalorder %s25, 0
      %p58 = por %p56, %p57
      %p59 = scmp.ne.s32.totalorder %s45, %s46
      %p60 = scmp.eq.s32.totalorder %s26, 3
      %p61 = por %p59, %p60
      %p63 = scmp.ne.s32.totalorder %s46, %s62
      %p64 = scmp.eq.s32.totalorder %s26, 0
      %p65 = por %p63, %p64
      %s66 = ssub.s32 %s27, %s39
      %p67 = scmp.eq.s32.totalorder %s66, 0
      %s69 = sadd.s32 %s68, 1
      %s70 = scalar_select %p67, %s68, %s69
      %p73 = pneg %p67
      %p74 = scmp.eq.s32.totalorder %s20, 3
      %p75 = por %p73, %p74
      %p76 = scmp.ne.s32.totalorder %s68, %s71
      %p77 = scmp.eq.s32.totalorder %s20, 0
      %p78 = por %p76, %p77
      %p79 = scmp.ne.s32.totalorder %s68, %s71
      %p80 = scmp.eq.s32.totalorder %s25, 3
      %p81 = por %p79, %p80
      %p82 = scmp.ne.s32.totalorder %s71, %s72
      %p83 = scmp.eq.s32.totalorder %s25, 0
      %p84 = por %p82, %p83
      %p85 = scmp.ne.s32.totalorder %s71, %s72
      %p86 = scmp.eq.s32.totalorder %s26, 3
      %p87 = por %p85, %p86
      %p89 = scmp.ne.s32.totalorder %s72, %s88
      %p90 = scmp.eq.s32.totalorder %s26, 0
      %p91 = por %p89, %p90
      %s92 = ssub.s32 %s28, %s35
      %p93 = scmp.eq.s32.totalorder %s92, 0
      %s95 = sadd.s32 %s94, 1
      %s96 = scalar_select %p93, %s94, %s95
      %p99 = pneg %p93
      %p100 = scmp.eq.s32.totalorder %s20, 3
      %p101 = por %p99, %p100
      %p102 = scmp.ne.s32.totalorder %s94, %s97
      %p103 = scmp.eq.s32.totalorder %s20, 0
      %p104 = por %p102, %p103
      %p105 = scmp.ne.s32.totalorder %s94, %s97
      %p106 = scmp.eq.s32.totalorder %s25, 3
      %p107 = por %p105, %p106
      %p108 = scmp.ne.s32.totalorder %s97, %s98
      %p109 = scmp.eq.s32.totalorder %s25, 0
      %p110 = por %p108, %p109
      %p111 = scmp.ne.s32.totalorder %s97, %s98
      %p112 = scmp.eq.s32.totalorder %s26, 3
      %p113 = por %p111, %p112
      %p115 = scmp.ne.s32.totalorder %s98, %s114
      %p116 = scmp.eq.s32.totalorder %s26, 0
      %p117 = por %p115, %p116
      %s118 = ssub.s32 %s27, %s39
      %p119 = scmp.eq.s32.totalorder %s118, 0
      %s121 = sadd.s32 %s120, 1
      %s122 = scalar_select %p119, %s120, %s121
      %p125 = pneg %p119
      %p126 = scmp.eq.s32.totalorder %s20, 3
      %p127 = por %p125, %p126
      %p128 = scmp.ne.s32.totalorder %s120, %s123
      %p129 = scmp.eq.s32.totalorder %s20, 0
      %p130 = por %p128, %p129
      %p131 = scmp.ne.s32.totalorder %s120, %s123
      %p132 = scmp.eq.s32.totalorder %s25, 3
      %p133 = por %p131, %p132
      %p134 = scmp.ne.s32.totalorder %s123, %s124
      %p135 = scmp.eq.s32.totalorder %s25, 0
      %p136 = por %p134, %p135
      %p137 = scmp.ne.s32.totalorder %s123, %s124
      %p138 = scmp.eq.s32.totalorder %s26, 3
      %p139 = por %p137, %p138
      %p141 = scmp.ne.s32.totalorder %s124, %s140
      %p142 = scmp.eq.s32.totalorder %s26, 0
      %p143 = por %p141, %p142
      %p144 = scmp.le.s32.totalorder 1, %s20
      %p145 = scmp.lt.s32.totalorder %s20, 5
      %p146 = pnand %p144, %p145
      %p147 = pneg %p146
      // Predicated region
      $region9: #{tpu_custom_call.1} parent=5 // pred_check
        _
      $region10: #{tpu_custom_call.1} parent=5 // pred_check_branch
        %149 = sbr.rel (%p146) target = $region12
      $region11: #{tpu_custom_call.1} parent=5 // pred_region
        %s150 = ssub.s32 %s20, 1
        // Predicated region
        $region13: #{tpu_custom_call.1} parent=11 // pred_check
          %p151 = pneg %p58
        $region14: #{tpu_custom_call.1} parent=11 // pred_check_branch
          %153 = sbr.rel (%p151) target = $region16
        $region15: #{tpu_custom_call.1} parent=11 // pred_region
          %s154 = smul.u32 2, %s29
          %p155 = scmp.lt.s32.totalorder %s154, 1
          %s156 = scalar_select %p155, %s154, 1
          %s157 = smul.addr %s156, 8
          %s158 = scalar_lea.vmem %s1, %s157
          %s159 = smul.u32 2, %s29
        $region16: #{tpu_custom_call.1} parent=11 // pred_fallthru
          _
        // Predicated region
        $region17: #{tpu_custom_call.1} parent=11 // pred_check
          %p160 = pneg %p84
        $region18: #{tpu_custom_call.1} parent=11 // pred_check_branch
          %162 = sbr.rel (%p160) target = $region20
        $region19: #{tpu_custom_call.1} parent=11 // pred_region
          %s163 = smul.u32 2, %s29
          %p164 = scmp.lt.s32.totalorder %s163, 1
          %s165 = scalar_select %p164, %s163, 1
          %s166 = smul.addr %s165, 8
          %s167 = scalar_lea.vmem %s2, %s166
          %s168 = smul.u32 2, %s29
        $region20: #{tpu_custom_call.1} parent=11 // pred_fallthru
          _
      $region12: #{tpu_custom_call.1} parent=5 // pred_fallthru
        _
      %p169 = scmp.lt.s32.totalorder %s20, 4
      // Predicated region
      $region21: #{tpu_custom_call.1} parent=5 // pred_check
        %p170 = pneg %p169
      $region22: #{tpu_custom_call.1} parent=5 // pred_check_branch
        %172 = sbr.rel (%p170) target = $region24
      $region23: #{tpu_custom_call.1} parent=5 // pred_region
        // Predicated region
        $region25: #{tpu_custom_call.1} parent=23 // pred_check
          %p173 = pneg %p104
        $region26: #{tpu_custom_call.1} parent=23 // pred_check_branch
          %175 = sbr.rel (%p173) target = $region28
        $region27: #{tpu_custom_call.1} parent=23 // pred_region
          %s176 = sand.u32 %s94, 1
          %s177 = scalar_lea.sflag [#allocation6], %s176
          %s178 = sand.u32 %s94, 1
          %s179 = smul.addr %s178, 128
          %s180 = scalar_lea.vmem [#allocation5], %s179
          %s182 = ssub.s32 2048, 2048
          %183 = vsyncadd %s177, %s182
          %s184 = smul.addr %s28, 16
          %s185 = smul.addr %s184, 128
          %s186 = scalar_lea.hbm %s3, %s185
          %s187 = sshll.u32 %s180, 4
          %s188 = int_to_ptr.vmem [resolvable:$true] %s187
          %193 = dma.hbm_to_vmem [thread:$0]  %s186, 2048, %s188, %s177, 128, 128, 8
        $region28: #{tpu_custom_call.1} parent=23 // pred_fallthru
          _
      $region24: #{tpu_custom_call.1} parent=5 // pred_fallthru
        _
      %p194 = scmp.le.s32.totalorder 1, %s20
      %p195 = scmp.lt.s32.totalorder %s20, 5
      %p196 = pnand %p194, %p195
      %p197 = pneg %p196
      // Predicated region
      $region29: #{tpu_custom_call.1} parent=5 // pred_check
        _
      $region30: #{tpu_custom_call.1} parent=5 // pred_check_branch
        %199 = sbr.rel (%p196) target = $region32
      $region31: #{tpu_custom_call.1} parent=5 // pred_region
        %s200 = ssub.s32 %s20, 1
        %s201 = sand.u32 %s97, 1
        %s202 = scalar_lea.sflag [#allocation6], %s201
        %s203 = sand.u32 %s97, 1
        %s204 = smul.addr %s203, 128
        %s205 = scalar_lea.vmem [#allocation5], %s204
        // Predicated region
        $region33: #{tpu_custom_call.1} parent=31 // pred_check
          %p206 = pneg %p110
        $region34: #{tpu_custom_call.1} parent=31 // pred_check_branch
          %208 = sbr.rel (%p206) target = $region36
        $region35: #{tpu_custom_call.1} parent=31 // pred_region
          %209 = dma.done %s202, 2048
        $region36: #{tpu_custom_call.1} parent=31 // pred_fallthru
          _
        %s210 = smul.u32 2, %s29
        %p211 = scmp.lt.s32.totalorder %s210, 1
        %s212 = scalar_select %p211, %s210, 1
        %s213 = smul.addr %s212, 8
        %s214 = scalar_lea.vmem %s1, %s213
        %p215 = pneg %p58
        %p216 = pneg %p55
        %s217 = smul.u32 2, %s29
        %p218 = scmp.lt.s32.totalorder %s217, 1
        %s219 = scalar_select %p218, %s217, 1
        %s220 = smul.addr %s219, 8
        %s221 = scalar_lea.vmem %s2, %s220
        %p222 = pneg %p84
        %p223 = pneg %p81
        %s224 = sand.u32 %s97, 1
        %s225 = scalar_lea.sflag [#allocation6], %s224
        %s226 = sand.u32 %s97, 1
        %s227 = smul.addr %s226, 128
        %s228 = scalar_lea.vmem [#allocation5], %s227
        %p229 = pneg %p110
        %p230 = pneg %p107
        %p231 = pneg %p136
        %p232 = pneg %p133
        %s233 = smul.u32 2, %s29
        %p234 = scmp.lt.s32.totalorder %s233, 1
        %s235 = scalar_select %p234, %s233, 1
        %s236 = smul.addr %s235, 8
        %s237 = scalar_lea.vmem %s1, %s236
        %s238 = smul.u32 2, %s29
        %s239 = smul.u32 2, %s29
        %p240 = scmp.lt.s32.totalorder %s239, 1
        %s241 = scalar_select %p240, %s239, 1
        %s242 = smul.addr %s241, 8
        %s243 = scalar_lea.vmem %s2, %s242
        %s244 = smul.u32 2, %s29
        %s245 = smul.u32 2, %s29
        %p246 = scmp.eq.s32.totalorder %s30, 0
        // Predicated region
        $region37: #{tpu_custom_call.1} parent=31 // pred_check
          %p247 = pneg %p246
        $region38: #{tpu_custom_call.1} parent=31 // pred_check_branch
          %249 = sbr.rel (%p247) target = $region40
        $region39: #{tpu_custom_call.1} parent=31 // pred_region
          %250 = vst [vmem:[#allocation2] sm:$0xff] 0.0
          %251 = vst [vmem:[#allocation2 + $0x8] sm:$0xff] 0.0
        $region40: #{tpu_custom_call.1} parent=31 // pred_fallthru
          _
        %s252 = sshra.s32 %s30, 7
        %s253 = sand.u32 %s30, 127
        %s254 = sadd.s32 %s252, %s29
        %s255 = smul.u32 %s254, 128
        %s256 = sshra.s32 %s30, 7
        %s257 = sand.u32 %s30, 127
        %s258 = sadd.s32 %s255, %s257
        %s259 = sld [smem:[#allocation4 + %s258]]
        %p260 = scmp.ne.s32.totalorder %s259, 0
        // Predicated region
        $region41: #{tpu_custom_call.1} parent=31 // pred_check
          %p261 = pneg %p260
        $region42: #{tpu_custom_call.1} parent=31 // pred_check_branch
          %263 = sbr.rel (%p261) target = $region44
        $region43: #{tpu_custom_call.1} parent=31 // pred_region
          %v264 = vld [vmem:[%s243] sm:$0xff]
          %v265 = vld [vmem:[%s243 + $0x8] sm:$0xff]
          %v266 = vld [vmem:[%s205] sm:$0xff]
          %v267 = vld [vmem:[%s205 + $0x8] sm:$0xff]
          %v268 = vld [vmem:[%s205 + $0x10] sm:$0xff]
          %v269 = vld [vmem:[%s205 + $0x18] sm:$0xff]
          %v270 = vld [vmem:[%s205 + $0x20] sm:$0xff]
          %v271 = vld [vmem:[%s205 + $0x28] sm:$0xff]
          %v272 = vld [vmem:[%s205 + $0x30] sm:$0xff]
          %v273 = vld [vmem:[%s205 + $0x38] sm:$0xff]
          %v274 = vld [vmem:[%s205 + $0x40] sm:$0xff]
          %v275 = vld [vmem:[%s205 + $0x48] sm:$0xff]
          %v276 = vld [vmem:[%s205 + $0x50] sm:$0xff]
          %v277 = vld [vmem:[%s205 + $0x58] sm:$0xff]
          %v278 = vld [vmem:[%s205 + $0x60] sm:$0xff]
          %v279 = vld [vmem:[%s205 + $0x68] sm:$0xff]
          %v280 = vld [vmem:[%s205 + $0x70] sm:$0xff]
          %v281 = vld [vmem:[%s205 + $0x78] sm:$0xff]
          %282 = vmatprep.subr.mxu0 0.0
          %283 = vmatpush1.xpose.msra.mxu0 %v266
          %284 = vmatprep.subr.mxu0 0.0
          %285 = vmatpush1.xpose.msra.mxu0 %v267
          %286 = vmatprep.subr.mxu0 0.0
          %287 = vmatpush1.xpose.msra.mxu0 %v268
          %288 = vmatprep.subr.mxu0 0.0
          %289 = vmatpush1.xpose.msra.mxu0 %v269
          %290 = vmatprep.subr.mxu0 0.0
          %291 = vmatpush1.xpose.msra.mxu0 %v270
          %292 = vmatprep.subr.mxu0 0.0
          %293 = vmatpush1.xpose.msra.mxu0 %v271
          %294 = vmatprep.subr.mxu0 0.0
          %295 = vmatpush1.xpose.msra.mxu0 %v272
          %296 = vmatprep.subr.mxu0 0.0
          %297 = vmatpush1.xpose.msra.mxu0 %v273
          %298 = vmatprep.subr.mxu0 0.0
          %299 = vmatpush1.xpose.msra.mxu0 %v274
          %300 = vmatprep.subr.mxu0 0.0
          %301 = vmatpush1.xpose.msra.mxu0 %v275
          %302 = vmatprep.subr.mxu0 0.0
          %303 = vmatpush1.xpose.msra.mxu0 %v276
          %304 = vmatprep.subr.mxu0 0.0
          %305 = vmatpush1.xpose.msra.mxu0 %v277
          %306 = vmatprep.subr.mxu0 0.0
          %307 = vmatpush1.xpose.msra.mxu0 %v278
          %308 = vmatprep.subr.mxu0 0.0
          %309 = vmatpush1.xpose.msra.mxu0 %v279
          %310 = vmatprep.subr.mxu0 0.0
          %311 = vmatpush1.xpose.msra.mxu0 %v280
          %312 = vmatprep.subr.mxu0 0.0
          %313 = vmatpush1.xpose.msra.mxu0 %v281
          %314 = vmatprep.subr.mxu0 0.0
          %315 = vmatpush1.xpose.msra.mxu0 0.0
          %316 = vmatprep.subr.mxu0 0.0
          %317 = vmatpush1.xpose.msra.mxu0 0.0
          %318 = vmatprep.subr.mxu0 0.0
          %319 = vmatpush1.xpose.msra.mxu0 0.0
          %320 = vmatprep.subr.mxu0 0.0
          %321 = vmatpush1.xpose.msra.mxu0 0.0
          %322 = vmatprep.subr.mxu0 0.0
          %323 = vmatpush1.xpose.msra.mxu0 0.0
          %324 = vmatprep.subr.mxu0 0.0
          %325 = vmatpush1.xpose.msra.mxu0 0.0
          %326 = vmatprep.subr.mxu0 0.0
          %327 = vmatpush1.xpose.msra.mxu0 0.0
          %328 = vmatprep.subr.mxu0 0.0
          %329 = vmatpush1.xpose.msra.mxu0 0.0
          %330 = vmatprep.subr.mxu0 0.0
          %331 = vmatpush1.xpose.msra.mxu0 0.0
          %332 = vmatprep.subr.mxu0 0.0
          %333 = vmatpush1.xpose.msra.mxu0 0.0
          %334 = vmatprep.subr.mxu0 0.0
          %335 = vmatpush1.xpose.msra.mxu0 0.0
          %336 = vmatprep.subr.mxu0 0.0
          %337 = vmatpush1.xpose.msra.mxu0 0.0
          %338 = vmatprep.subr.mxu0 0.0
          %339 = vmatpush1.xpose.msra.mxu0 0.0
          %340 = vmatprep.subr.mxu0 0.0
          %341 = vmatpush1.xpose.msra.mxu0 0.0
          %342 = vmatprep.subr.mxu0 0.0
          %343 = vmatpush1.xpose.msra.mxu0 0.0
          %344 = vmatprep.subr.mxu0 0.0
          %345 = vmatpush1.xpose.msra.mxu0 0.0
          %346 = vmatprep.mubr.f32.mxu0 0.0
          %347 = vmatmul.mubr.f32.gmra.mrb[0].mxu0 %v264
          %v348 = vpop.f32.mrb[0].mxu0
          %v349 = vadd.f32 0.0, %v348
          %v350 = vpop.f32.mrb[0].mxu0
          %351 = vmatprep.mubr.f32.mxu0 0.0
          %352 = vmatmul.mubr.f32.gmra.mrb[0].mxu0 %v265
          %v353 = vpop.f32.mrb[0].mxu0
          %v354 = vadd.f32 0.0, %v353
          %v355 = vpop.f32.mrb[0].mxu0
          %356 = vdwg.mxu0
          %v357 = vld [vmem:[%s237] sm:$0xff]
          %v358 = vld [vmem:[%s237 + $0x8] sm:$0xff]
          %v359 = vstv %s30
          %vm360 = vcmp.eq.s32.totalorder %v357, %v359
          %vm361 = vcmp.eq.s32.totalorder %v358, %v359
          %v362 = vld [vmem:[#allocation2] sm:$0xff]
          %v363 = vld [vmem:[#allocation2 + $0x8] sm:$0xff]
          %v364 = vsel %vm360, 1, 0
          %v365 = vsel %vm361, 1, 0
          %366 = vset.pattern.permute.xlu0 0
          %367 = vperm.xlu0 %366, %v364
          %v368 = vpop.permute.xlu0 %367
          %369 = vset.pattern.permute.xlu0 0
          %370 = vperm.xlu0 %369, %v365
          %v371 = vpop.permute.xlu0 %370
          %vm372 = vcmp.eq.s32.totalorder %v368, 1
          %vm373 = vcmp.eq.s32.totalorder %v371, 1
          %v374 = vsel %vm372, %v349, 0.0
          %v375 = vsel %vm373, %v354, 0.0
          %v376 = vadd.f32 %v362, %v374
          %v377 = vadd.f32 %v363, %v375
          %378 = vst [vmem:[#allocation2] sm:$0xff] %v376
          %379 = vst [vmem:[#allocation2 + $0x8] sm:$0xff] %v377
        $region44: #{tpu_custom_call.1} parent=31 // pred_fallthru
          _
        %p380 = scmp.eq.s32.totalorder %s30, 3
        // Predicated region
        $region45: #{tpu_custom_call.1} parent=31 // pred_check
          %p381 = pneg %p380
        $region46: #{tpu_custom_call.1} parent=31 // pred_check_branch
          %383 = sbr.rel (%p381) target = $region48
        $region47: #{tpu_custom_call.1} parent=31 // pred_region
          %v384 = vld [vmem:[#allocation2] sm:$0xff]
          %v385 = vld [vmem:[#allocation2 + $0x8] sm:$0xff]
          %386 = vst [vmem:[#allocation8] sm:$0xff] %v384
          %387 = vst [vmem:[#allocation8 + $0x8] sm:$0xff] %v385
        $region48: #{tpu_custom_call.1} parent=31 // pred_fallthru
          _
        // Predicated region
        $region49: #{tpu_custom_call.1} parent=31 // pred_check
          %p388 = pneg %p133
        $region50: #{tpu_custom_call.1} parent=31 // pred_check_branch
          %390 = sbr.rel (%p388) target = $region52
        $region51: #{tpu_custom_call.1} parent=31 // pred_region
          %s391 = smul.u32 2, %s29
          %s393 = ssub.s32 256, 256
          %394 = vsyncadd [#allocation7], %s393
          %s395 = smul.addr %s391, 128
          %s396 = scalar_lea.hbm %s4, %s395
          %s397 = sshll.u32 [#allocation8], 4
          %s398 = int_to_ptr.vmem [resolvable:$true] %s397
          %403 = dma.vmem_to_hbm [thread:$0]  %s398, 256, %s396, [#allocation7], 128, 128, 8
        $region52: #{tpu_custom_call.1} parent=31 // pred_fallthru
          _
        // Predicated region
        $region53: #{tpu_custom_call.1} parent=31 // pred_check
          %p404 = pneg %p133
        $region54: #{tpu_custom_call.1} parent=31 // pred_check_branch
          %406 = sbr.rel (%p404) target = $region56
        $region55: #{tpu_custom_call.1} parent=31 // pred_region
          %407 = dma.done [#allocation7], 256
        $region56: #{tpu_custom_call.1} parent=31 // pred_fallthru
          _
      $region32: #{tpu_custom_call.1} parent=5 // pred_fallthru
        _
      %p408 = scmp.le.s32.totalorder 2, %s20
      // Predicated region
      $region57: #{tpu_custom_call.1} parent=5 // pred_check
        %p409 = pneg %p408
      $region58: #{tpu_custom_call.1} parent=5 // pred_check_branch
        %411 = sbr.rel (%p409) target = $region60
      $region59: #{tpu_custom_call.1} parent=5 // pred_region
        %s412 = ssub.s32 %s20, 2
      $region60: #{tpu_custom_call.1} parent=5 // pred_fallthru
        _
    $region6: #{tpu_custom_call.1} parent=1 // loop_footer
      %s24 = sadd.s32 1, %s20
    $region7: #{tpu_custom_call.1} parent=1 // loop_footer_branch
      %19 = sbr.rel target = $region3
    $region8: #{tpu_custom_call.1} parent=1 // loop_exit
      _
    %413 = vsyncpa [#allocation6], 1
    %s414 = scalar_lea.sflag [#allocation6], 1
    %415 = vsyncpa %s414, 1
    %416 = vsyncpa [#allocation7], 1
    %s417 = scalar_lea.sflag [#allocation7], 1
    %418 = vsyncpa %s417, 1

</llo_original>
